<compile_context>
chip_gen: v5e
topology: v5e:2x2
jax: 0.10.0
libtpu: 0.0.40
codegen_flags: <defaults>
</compile_context>

<pallas_src>
import functools

import jax
import jax.numpy as jnp
from jax.experimental import pallas as pl
from jax.experimental.pallas import tpu as pltpu


def _msa_kernel(xq_ref, xkv_ref, wq_ref, wk_ref, wv_ref, wout_ref, bout_ref,
                o_ref, k_sc, v_sc, *, heads, dim_head, scale):
    # Shapes:
    #   xq_ref   (1, TQ, D)    query-row tile of x
    #   xkv_ref  (1, N,  D)    full sequence of the current batch (for K/V projection)
    #   wq/wk/wv (D, H*dh)
    #   wout_ref (H, dh, D)    head-major output projection weight
    #   bout_ref (1, D)
    #   o_ref    (1, TQ, D)
    #   k_sc/v_sc (H, N, dh)   VMEM scratch carried across the query-tile grid axis
    h, dh = heads, dim_head
    qi = pl.program_id(1)

    # --- K/V projection: once per batch (query-tile 0), reused for all query tiles. ---
    @pl.when(qi == 0)
    def _project_kv():
        xkv = xkv_ref[0]                                                   # (N, D)
        n = xkv.shape[0]
        k = jnp.dot(xkv, wk_ref[...], preferred_element_type=jnp.float32)  # (N, H*dh)
        v = jnp.dot(xkv, wv_ref[...], preferred_element_type=jnp.float32)
        # 'n (h d) -> h n d' once (single relayout; no per-head sub-lane slicing).
        k_sc[...] = jnp.transpose(k.reshape(n, h, dh), (1, 0, 2)).astype(k_sc.dtype)
        v_sc[...] = jnp.transpose(v.reshape(n, h, dh), (1, 0, 2)).astype(v_sc.dtype)

    # --- Q projection for this query tile (softmax scale folded into q). ---
    xq = xq_ref[0]                                                         # (TQ, D)
    tq = xq.shape[0]
    q = jnp.dot(xq, wq_ref[...], preferred_element_type=jnp.float32) * scale
    q = jnp.transpose(q.reshape(tq, h, dh), (1, 0, 2)).astype(k_sc.dtype)  # (H, TQ, dh)

    kh = k_sc[...]                                                         # (H, N, dh)
    vh = v_sc[...]

    # --- Attention, batched over heads (one dot_general each; no explicit k.T). ---
    logits = jnp.einsum('hqd,hkd->hqk', q, kh,
                        preferred_element_type=jnp.float32)                # (H, TQ, N)
    m = jnp.max(logits, axis=-1, keepdims=True)
    e = jnp.exp(logits - m)
    denom = jnp.sum(e, axis=-1, keepdims=True)
    p = e * pl.reciprocal(denom, approx=True)                              # softmax (EUP recip)
    ctx = jnp.einsum('hqk,hkd->hqd', p.astype(vh.dtype), vh,
                     preferred_element_type=jnp.float32)                   # (H, TQ, dh)

    # --- Output projection: per-head matmul + sum over heads == concat + big matmul. ---
    proj = jnp.einsum('hqd,hde->hqe', ctx.astype(wout_ref.dtype), wout_ref[...],
                      preferred_element_type=jnp.float32)                  # (H, TQ, D)
    out = jnp.sum(proj, axis=0) + bout_ref[0]                              # (TQ, D)
    o_ref[0] = out.astype(o_ref.dtype)


def msa_forward(x, w_qkv, w_out, b_out, *, heads, dim_head, q_tile=128):
    """x: (B, N, D).  w_qkv: (D, 3*H*dh).  w_out: (H*dh, D).  b_out: (1, D)."""
    B, N, D = x.shape
    inner = heads * dim_head
    scale = float(dim_head) ** -0.5

    tq = N if N <= q_tile else q_tile
    assert N % tq == 0, "sequence length must divide into query tiles"
    n_q_tiles = N // tq

    # Wrapper-side layout plumbing (no extra in-kernel compute):
    #   split to_qkv weight into separate q/k/v blocks; make to_out weight head-major.
    w_q = w_qkv[:, 0 * inner:1 * inner]
    w_k = w_qkv[:, 1 * inner:2 * inner]
    w_v = w_qkv[:, 2 * inner:3 * inner]
    w_out_h = w_out.reshape(heads, dim_head, D)

    kernel = functools.partial(_msa_kernel, heads=heads, dim_head=dim_head, scale=scale)

    # NOTE: weight BlockSpecs have constant index_maps, so they are only DMA'd once; for
    # very large configs consider pipeline_mode=pl.Buffered(1) / vmem_limit_bytes to
    # reclaim the second pipeline buffer (especially on v7x's 64 MiB VMEM).
    return pl.pallas_call(
        kernel,
        out_shape=jax.ShapeDtypeStruct((B, N, D), x.dtype),
        grid_spec=pltpu.PrefetchScalarGridSpec(
            num_scalar_prefetch=0,
            grid=(B, n_q_tiles),
            in_specs=[
                pl.BlockSpec((1, tq, D), lambda b, qi: (b, qi, 0)),           # x (query tile)
                pl.BlockSpec((1, N, D), lambda b, qi: (b, 0, 0)),             # x (full, K/V)
                pl.BlockSpec((D, inner), lambda b, qi: (0, 0)),               # w_q
                pl.BlockSpec((D, inner), lambda b, qi: (0, 0)),               # w_k
                pl.BlockSpec((D, inner), lambda b, qi: (0, 0)),               # w_v
                pl.BlockSpec((heads, dim_head, D), lambda b, qi: (0, 0, 0)),  # w_out head-major
                pl.BlockSpec((1, D), lambda b, qi: (0, 0)),                   # b_out
            ],
            out_specs=pl.BlockSpec((1, tq, D), lambda b, qi: (b, qi, 0)),
            scratch_shapes=[
                pltpu.VMEM((heads, N, dim_head), x.dtype),   # K, head-major
                pltpu.VMEM((heads, N, dim_head), x.dtype),   # V, head-major
            ],
        ),
        compiler_params=pltpu.CompilerParams(
            # batch is independent work (megacore-shardable); query tiles carry K/V scratch.
            dimension_semantics=("parallel", "arbitrary"),
        ),
    )(x, x, w_q, w_k, w_v, w_out_h, b_out)


def msa_reference(x, w_qkv, w_out, b_out, *, heads, dim_head):
    """Plain-JAX reference matching the PyTorch forward (eval mode)."""
    B, N, D = x.shape
    inner = heads * dim_head
    scale = float(dim_head) ** -0.5

    qkv = jnp.einsum("bnd,de->bne", x, w_qkv)
    q, k, v = jnp.split(qkv, 3, axis=-1)

    def split_heads(t):  # 'b n (h d) -> b h n d'
        return t.reshape(B, N, heads, dim_head).transpose(0, 2, 1, 3)

    q, k, v = map(split_heads, (q, k, v))
    dots = jnp.einsum("bhid,bhjd->bhij", q, k) * scale
    attn = jax.nn.softmax(dots, axis=-1)
    out = jnp.einsum("bhij,bhjd->bhid", attn, v)
    out = out.transpose(0, 2, 1, 3).reshape(B, N, inner)   # 'b h n d -> b n (h d)'
    return jnp.einsum("bne,ed->bnd", out, w_out) + b_out[0]


if __name__ == "__main__":
    # Small shapes consistent with the module's forward: x is (b, n, dim).
    # N=16 with q_tile=8 exercises the query-tile grid axis and the K/V scratch carry.
    B, N, DIM = 2, 16, 32
    HEADS, DIM_HEAD = 2, 16
    INNER = HEADS * DIM_HEAD

    key = jax.random.PRNGKey(0)
    kx, kqkv, kout, kbias = jax.random.split(key, 4)

    x = jax.random.normal(kx, (B, N, DIM), dtype=jnp.float32)
    # Deterministic synthetic parameters (stored as [in, out]).
    w_qkv = 0.05 * jax.random.normal(kqkv, (DIM, 3 * INNER), dtype=jnp.float32)
    w_out = 0.05 * jax.random.normal(kout, (INNER, DIM), dtype=jnp.float32)
    b_out = 0.05 * jax.random.normal(kbias, (1, DIM), dtype=jnp.float32)

    y = msa_forward(x, w_qkv, w_out, b_out, heads=HEADS, dim_head=DIM_HEAD, q_tile=8)
    y = jax.block_until_ready(y)

    y_ref = msa_reference(x, w_qkv, w_out, b_out, heads=HEADS, dim_head=DIM_HEAD)
    assert y.shape == (B, N, DIM)
    # approx-reciprocal softmax -> slightly looser tolerance than exact f32.
    assert jnp.allclose(y, y_ref, atol=2e-3, rtol=2e-3), "Pallas MSA mismatch vs reference"

    print("KERNEL_OK")
</pallas_src>

<mosaic_0001>
module attributes {stable_mosaic.version = 11 : i64} {
  func.func @_msa_kernel(%arg0: i32, %arg1: i32, %arg2: memref<1x8x32xf32, #tpu.memory_space<vmem>>, %arg3: memref<1x16x32xf32, #tpu.memory_space<vmem>>, %arg4: memref<32x32xf32, #tpu.memory_space<vmem>>, %arg5: memref<32x32xf32, #tpu.memory_space<vmem>>, %arg6: memref<32x32xf32, #tpu.memory_space<vmem>>, %arg7: memref<2x16x32xf32, #tpu.memory_space<vmem>>, %arg8: memref<1x32xf32, #tpu.memory_space<vmem>>, %arg9: memref<1x8x32xf32, #tpu.memory_space<vmem>>, %arg10: memref<2x16x16xf32, #tpu.memory_space<vmem>>, %arg11: memref<2x16x16xf32, #tpu.memory_space<vmem>>) attributes {dimension_semantics = [#tpu.dimension_semantics<parallel>, #tpu.dimension_semantics<arbitrary>], iteration_bounds = array<i64: 2, 2>, scalar_prefetch = 0 : i64, scratch_operands = 2 : i64, tpu.core_type = #tpu.core_type<tc>, window_params = [{transform_indices = @transform_0, window_bounds = array<i64: 1, 8, 32>}, {transform_indices = @transform_1, window_bounds = array<i64: 1, 16, 32>}, {pipeline_mode = #tpu.pipeline_mode<synchronous>, transform_indices = @transform_2, window_bounds = array<i64: 32, 32>}, {pipeline_mode = #tpu.pipeline_mode<synchronous>, transform_indices = @transform_3, window_bounds = array<i64: 32, 32>}, {pipeline_mode = #tpu.pipeline_mode<synchronous>, transform_indices = @transform_4, window_bounds = array<i64: 32, 32>}, {pipeline_mode = #tpu.pipeline_mode<synchronous>, transform_indices = @transform_5, window_bounds = array<i64: 2, 16, 32>}, {pipeline_mode = #tpu.pipeline_mode<synchronous>, transform_indices = @transform_6, window_bounds = array<i64: 1, 32>}, {transform_indices = @transform_7, window_bounds = array<i64: 1, 8, 32>}]} {
    %c0_i32 = arith.constant 0 : i32
    %0 = arith.cmpi eq, %arg1, %c0_i32 : i32
    %1 = arith.extui %0 : i1 to i32
    %c0_i32_0 = arith.constant 0 : i32
    %2 = arith.cmpi ne, %1, %c0_i32_0 : i32
    scf.if %2 {
      %c0_26 = arith.constant 0 : index
      %c0_27 = arith.constant 0 : index
      %c0_28 = arith.constant 0 : index
      %36 = vector.load %arg3[%c0_26, %c0_27, %c0_28] : memref<1x16x32xf32, #tpu.memory_space<vmem>>, vector<1x16x32xf32>
      %37 = vector.shape_cast %36 : vector<1x16x32xf32> to vector<16x32xf32>
      %c0_29 = arith.constant 0 : index
      %c0_30 = arith.constant 0 : index
      %38 = vector.load %arg5[%c0_29, %c0_30] : memref<32x32xf32, #tpu.memory_space<vmem>>, vector<32x32xf32>
      %cst_31 = arith.constant dense<0.000000e+00> : vector<16x32xf32>
      %39 = tpu.matmul %37, %38, %cst_31 {dimension_numbers = #tpu.dot_dimension_numbers<[1], [0], [0], [1], [0, 0, 1, 1], [], []>} : vector<16x32xf32>, vector<32x32xf32>, vector<16x32xf32> -> vector<16x32xf32>
      %c0_32 = arith.constant 0 : index
      %c0_33 = arith.constant 0 : index
      %40 = vector.load %arg6[%c0_32, %c0_33] : memref<32x32xf32, #tpu.memory_space<vmem>>, vector<32x32xf32>
      %cst_34 = arith.constant dense<0.000000e+00> : vector<16x32xf32>
      %41 = tpu.matmul %37, %40, %cst_34 {dimension_numbers = #tpu.dot_dimension_numbers<[1], [0], [0], [1], [0, 0, 1, 1], [], []>} : vector<16x32xf32>, vector<32x32xf32>, vector<16x32xf32> -> vector<16x32xf32>
      %42 = vector.shape_cast %39 : vector<16x32xf32> to vector<16x2x16xf32>
      %43 = tpu.transpose %42, [1, 0, 2] : vector<16x2x16xf32> -> vector<2x16x16xf32>
      %c0_35 = arith.constant 0 : index
      %c0_36 = arith.constant 0 : index
      %c0_37 = arith.constant 0 : index
      %44 = vector.load %arg10[%c0_35, %c0_36, %c0_37] : memref<2x16x16xf32, #tpu.memory_space<vmem>>, vector<2x16x16xf32>
      tpu.vector_store %arg10[%c0_35, %c0_36, %c0_37], %43 {strides = array<i32>} : memref<2x16x16xf32, #tpu.memory_space<vmem>>, vector<2x16x16xf32>,
      %45 = vector.shape_cast %41 : vector<16x32xf32> to vector<16x2x16xf32>
      %46 = tpu.transpose %45, [1, 0, 2] : vector<16x2x16xf32> -> vector<2x16x16xf32>
      %c0_38 = arith.constant 0 : index
      %c0_39 = arith.constant 0 : index
      %c0_40 = arith.constant 0 : index
      %47 = vector.load %arg11[%c0_38, %c0_39, %c0_40] : memref<2x16x16xf32, #tpu.memory_space<vmem>>, vector<2x16x16xf32>
      tpu.vector_store %arg11[%c0_38, %c0_39, %c0_40], %46 {strides = array<i32>} : memref<2x16x16xf32, #tpu.memory_space<vmem>>, vector<2x16x16xf32>,
    } else {
    }
    %c0 = arith.constant 0 : index
    %c0_1 = arith.constant 0 : index
    %c0_2 = arith.constant 0 : index
    %3 = vector.load %arg2[%c0, %c0_1, %c0_2] : memref<1x8x32xf32, #tpu.memory_space<vmem>>, vector<1x8x32xf32>
    %4 = vector.shape_cast %3 : vector<1x8x32xf32> to vector<8x32xf32>
    %c0_3 = arith.constant 0 : index
    %c0_4 = arith.constant 0 : index
    %5 = vector.load %arg4[%c0_3, %c0_4] : memref<32x32xf32, #tpu.memory_space<vmem>>, vector<32x32xf32>
    %cst = arith.constant dense<0.000000e+00> : vector<8x32xf32>
    %6 = tpu.matmul %4, %5, %cst {dimension_numbers = #tpu.dot_dimension_numbers<[1], [0], [0], [1], [0, 0, 1, 1], [], []>} : vector<8x32xf32>, vector<32x32xf32>, vector<8x32xf32> -> vector<8x32xf32>
    %cst_5 = arith.constant 2.500000e-01 : f32
    %7 = vector.broadcast %cst_5 : f32 to vector<8x32xf32>
    %8 = arith.mulf %6, %7 : vector<8x32xf32>
    %9 = vector.shape_cast %8 : vector<8x32xf32> to vector<8x2x16xf32>
    %10 = tpu.transpose %9, [1, 0, 2] : vector<8x2x16xf32> -> vector<2x8x16xf32>
    %c0_6 = arith.constant 0 : index
    %c0_7 = arith.constant 0 : index
    %c0_8 = arith.constant 0 : index
    %11 = vector.load %arg10[%c0_6, %c0_7, %c0_8] : memref<2x16x16xf32, #tpu.memory_space<vmem>>, vector<2x16x16xf32>
    %c0_9 = arith.constant 0 : index
    %c0_10 = arith.constant 0 : index
    %c0_11 = arith.constant 0 : index
    %12 = vector.load %arg11[%c0_9, %c0_10, %c0_11] : memref<2x16x16xf32, #tpu.memory_space<vmem>>, vector<2x16x16xf32>
    "tpu.trace_start"() <{level = 10 : i32, message = "hqd,hkd->hqk"}> : () -> ()
    %cst_12 = arith.constant dense<0.000000e+00> : vector<2x8x16xf32>
    %13 = tpu.matmul %10, %11, %cst_12 {dimension_numbers = #tpu.dot_dimension_numbers<[2], [2], [1], [1], [0, 0, 0, 1, 1, 1], [0], [0]>} : vector<2x8x16xf32>, vector<2x16x16xf32>, vector<2x8x16xf32> -> vector<2x8x16xf32>
    "tpu.trace_stop"() : () -> ()
    %cst_13 = arith.constant dense<0xFF800000> : vector<2x8xf32>
    %14 = vector.multi_reduction <maximumf>, %13, %cst_13 [2] : vector<2x8x16xf32> to vector<2x8xf32>
    %15 = vector.shape_cast %14 : vector<2x8xf32> to vector<2x8x1xf32>
    %16 = vector.broadcast %15 : vector<2x8x1xf32> to vector<2x8x16xf32>
    %17 = arith.subf %13, %16 : vector<2x8x16xf32>
    %18 = math.exp %17 : vector<2x8x16xf32>
    %cst_14 = arith.constant dense<0.000000e+00> : vector<2x8xf32>
    %19 = vector.multi_reduction <add>, %18, %cst_14 [2] : vector<2x8x16xf32> to vector<2x8xf32>
    %20 = vector.shape_cast %19 : vector<2x8xf32> to vector<2x8x1xf32>
    %21 = tpu.reciprocal %20 {approx = true} : vector<2x8x1xf32> -> vector<2x8x1xf32>
    %22 = vector.broadcast %21 : vector<2x8x1xf32> to vector<2x8x16xf32>
    %23 = arith.mulf %18, %22 : vector<2x8x16xf32>
    "tpu.trace_start"() <{level = 10 : i32, message = "hqk,hkd->hqd"}> : () -> ()
    %cst_15 = arith.constant dense<0.000000e+00> : vector<2x8x16xf32>
    %24 = tpu.matmul %23, %12, %cst_15 {dimension_numbers = #tpu.dot_dimension_numbers<[2], [1], [1], [2], [0, 0, 0, 1, 1, 2], [0], [0]>} : vector<2x8x16xf32>, vector<2x16x16xf32>, vector<2x8x16xf32> -> vector<2x8x16xf32>
    "tpu.trace_stop"() : () -> ()
    %c0_16 = arith.constant 0 : index
    %c0_17 = arith.constant 0 : index
    %c0_18 = arith.constant 0 : index
    %25 = vector.load %arg7[%c0_16, %c0_17, %c0_18] : memref<2x16x32xf32, #tpu.memory_space<vmem>>, vector<2x16x32xf32>
    "tpu.trace_start"() <{level = 10 : i32, message = "hqd,hde->hqe"}> : () -> ()
    %cst_19 = arith.constant dense<0.000000e+00> : vector<2x8x32xf32>
    %26 = tpu.matmul %24, %25, %cst_19 {dimension_numbers = #tpu.dot_dimension_numbers<[2], [1], [1], [2], [0, 0, 0, 1, 1, 2], [0], [0]>} : vector<2x8x16xf32>, vector<2x16x32xf32>, vector<2x8x32xf32> -> vector<2x8x32xf32>
    "tpu.trace_stop"() : () -> ()
    %cst_20 = arith.constant dense<0.000000e+00> : vector<8x32xf32>
    %27 = vector.multi_reduction <add>, %26, %cst_20 [0] : vector<2x8x32xf32> to vector<8x32xf32>
    %c0_21 = arith.constant 0 : index
    %c0_22 = arith.constant 0 : index
    %28 = vector.load %arg8[%c0_21, %c0_22] : memref<1x32xf32, #tpu.memory_space<vmem>>, vector<1x32xf32>
    %29 = vector.shape_cast %28 : vector<1x32xf32> to vector<32xf32>
    %30 = vector.shape_cast %29 : vector<32xf32> to vector<1x32xf32>
    %31 = vector.broadcast %30 : vector<1x32xf32> to vector<8x32xf32>
    %32 = arith.addf %27, %31 : vector<8x32xf32>
    %c0_23 = arith.constant 0 : index
    %c0_24 = arith.constant 0 : index
    %c0_25 = arith.constant 0 : index
    %33 = vector.load %arg9[%c0_23, %c0_24, %c0_25] : memref<1x8x32xf32, #tpu.memory_space<vmem>>, vector<1x8x32xf32>
    %34 = vector.shape_cast %33 : vector<1x8x32xf32> to vector<8x32xf32>
    %35 = vector.shape_cast %32 : vector<8x32xf32> to vector<1x8x32xf32>
    tpu.vector_store %arg9[%c0_23, %c0_24, %c0_25], %35 {strides = array<i32>} : memref<1x8x32xf32, #tpu.memory_space<vmem>>, vector<1x8x32xf32>,
    return
  }
  func.func @transform_0(%arg0: i32, %arg1: i32) -> (i32, i32, i32) {
    %c0_i32 = arith.constant 0 : i32
    %c0_i32_0 = arith.constant 0 : i32
    return %arg0, %arg1, %c0_i32 : i32, i32, i32
  }
  func.func @transform_1(%arg0: i32, %arg1: i32) -> (i32, i32, i32) {
    %c0_i32 = arith.constant 0 : i32
    %c0_i32_0 = arith.constant 0 : i32
    %c0_i32_1 = arith.constant 0 : i32
    return %arg0, %c0_i32, %c0_i32_0 : i32, i32, i32
  }
  func.func @transform_2(%arg0: i32, %arg1: i32) -> (i32, i32) {
    %c0_i32 = arith.constant 0 : i32
    %c0_i32_0 = arith.constant 0 : i32
    %c0_i32_1 = arith.constant 0 : i32
    return %c0_i32, %c0_i32_0 : i32, i32
  }
  func.func @transform_3(%arg0: i32, %arg1: i32) -> (i32, i32) {
    %c0_i32 = arith.constant 0 : i32
    %c0_i32_0 = arith.constant 0 : i32
    %c0_i32_1 = arith.constant 0 : i32
    return %c0_i32, %c0_i32_0 : i32, i32
  }
  func.func @transform_4(%arg0: i32, %arg1: i32) -> (i32, i32) {
    %c0_i32 = arith.constant 0 : i32
    %c0_i32_0 = arith.constant 0 : i32
    %c0_i32_1 = arith.constant 0 : i32
    return %c0_i32, %c0_i32_0 : i32, i32
  }
  func.func @transform_5(%arg0: i32, %arg1: i32) -> (i32, i32, i32) {
    %c0_i32 = arith.constant 0 : i32
    %c0_i32_0 = arith.constant 0 : i32
    %c0_i32_1 = arith.constant 0 : i32
    %c0_i32_2 = arith.constant 0 : i32
    return %c0_i32, %c0_i32_0, %c0_i32_1 : i32, i32, i32
  }
  func.func @transform_6(%arg0: i32, %arg1: i32) -> (i32, i32) {
    %c0_i32 = arith.constant 0 : i32
    %c0_i32_0 = arith.constant 0 : i32
    %c0_i32_1 = arith.constant 0 : i32
    return %c0_i32, %c0_i32_0 : i32, i32
  }
  func.func @transform_7(%arg0: i32, %arg1: i32) -> (i32, i32, i32) {
    %c0_i32 = arith.constant 0 : i32
    %c0_i32_0 = arith.constant 0 : i32
    return %arg0, %arg1, %c0_i32 : i32, i32, i32
  }
}

</mosaic_0001>

<llo_original>
// kernel: tpu_custom_call.1
$region0: #{tpu_custom_call.1}
  #allocation0 [shape = 'u32[]', space=smem, size = 0x4, offset = 0x4, fixed_abs, tag = 'smem constant byte address 0x4 - core index']
  #allocation1 [shape = 'u32[72,128]{1,0:T(1,128)}', space=vmem, size = 0x9000, scoped, tag = 'internal scratch']
  #allocation2 [shape = 'f32[2,16,16]{2,1,0:T(8,128)}', space=vmem, size = 0x4000, scoped, tag = 'scratch operand']
  #allocation3 [shape = 'f32[2,16,16]{2,1,0:T(8,128)}', space=vmem, size = 0x4000, scoped, tag = 'scratch operand']
  %s0 = inlined_call_operand.hbm [shape: f32[2,16,32], index: 0, kind: input, shape index: {}]
  %s1 = inlined_call_operand.hbm [shape: f32[2,16,32], index: 1, kind: input, shape index: {}]
  %s2 = inlined_call_operand.hbm [shape: f32[32,32], index: 2, kind: input, shape index: {}]
  %s3 = inlined_call_operand.hbm [shape: f32[32,32], index: 3, kind: input, shape index: {}]
  %s4 = inlined_call_operand.hbm [shape: f32[32,32], index: 4, kind: input, shape index: {}]
  %s5 = inlined_call_operand.hbm [shape: f32[2,16,32], index: 5, kind: input, shape index: {}]
  %s6 = inlined_call_operand.vmem [shape: f32[1,32], index: 6, kind: input, shape index: {}]
  %s7 = inlined_call_operand.hbm [shape: f32[2,16,32], index: 7, kind: output, shape index: {}]
  %s8 = sld [smem:[#allocation0]]
  $region89: #{tpu_custom_call.1} parent=0
    _
  %s10 = ssub.s32 1, %s8
  %s11 = scalar_select 0, %s10, %s8
  $region1: #{tpu_custom_call.1} parent=0
    #allocation4 [shape = 'u8[8192]{0}', space=vmem, size = 0x2000, scoped, tag = 'input window, operand 0']
    #allocation5 [shape = 's32[2]{0}', space=sflag, size = 0x8, scoped, tag = 'scoped memory for tpu_custom_call.1']
    #allocation6 [shape = 's32[2]{0}', space=sflag, size = 0x8, scoped, tag = 'scoped memory for tpu_custom_call.1']
    #allocation7 [shape = 'u8[16384]{0}', space=vmem, size = 0x4000, scoped, tag = 'input window, operand 1']
    #allocation8 [shape = 's32[2]{0}', space=sflag, size = 0x8, scoped, tag = 'scoped memory for tpu_custom_call.1']
    #allocation9 [shape = 'u8[16384]{0}', space=vmem, size = 0x4000, scoped, tag = 'input window, operand 2, single buffered']
    #allocation10 [shape = 'u8[16384]{0}', space=vmem, size = 0x4000, scoped, tag = 'input window, operand 3, single buffered']
    #allocation11 [shape = 's32[1]{0}', space=sflag, size = 0x4, scoped, tag = 'scoped memory for tpu_custom_call.1']
    #allocation12 [shape = 'u8[16384]{0}', space=vmem, size = 0x4000, scoped, tag = 'input window, operand 4, single buffered']
    #allocation13 [shape = 'u8[16384]{0}', space=vmem, size = 0x4000, scoped, tag = 'input window, operand 5, single buffered']
    #allocation14 [shape = 's32[1]{0}', space=sflag, size = 0x4, scoped, tag = 'scoped memory for tpu_custom_call.1']
    #allocation15 [shape = 'u8[8192]{0}', space=vmem, size = 0x2000, scoped, tag = 'output window, operand 0']
    %12 = vsyncpa [#allocation5], 0
    %s13 = scalar_lea.sflag [#allocation5], 1
    %14 = vsyncpa %s13, 0
    %15 = vsyncpa [#allocation8], 0
    %s16 = scalar_lea.sflag [#allocation8], 1
    %17 = vsyncpa %s16, 0
    %18 = vsyncpa [#allocation11], 0
    %19 = vsyncpa [#allocation14], 0
    %20 = vsyncpa [#allocation6], 0
    %s21 = scalar_lea.sflag [#allocation6], 1
    %22 = vsyncpa %s21, 0
    loop: start=0, step=1, limit=6
    $region2: #{tpu_custom_call.1} parent=1 // loop_pre_header
      _
    $region3: #{tpu_custom_call.1} parent=1 // loop_header
      %s24 = sphi 0, %s28
      %p25 = scmp.ge.s32.totalorder %s24, 6
      %s31 = sphi 0, %s43
      %s32 = sphi 0, %s39
      %s33 = sphi 0, %s31
      %s34 = sphi 0, %s32
      %s35 = sphi 0, %s33
      %s36 = sphi 0, %s34
      %s48 = sphi 0, %s50
      %s51 = sphi 0, %s48
      %s52 = sphi 0, %s51
      %s68 = sphi 0, %s52
      %s74 = sphi 0, %s76
      %s77 = sphi 0, %s74
      %s78 = sphi 0, %s77
      %s94 = sphi 0, %s78
      %s98 = sphi 0, %s98
      %s100 = sphi 0, %s98
      %s101 = sphi 0, %s100
      %s115 = sphi 0, %s101
      %s119 = sphi 0, %s119
      %s121 = sphi 0, %s119
      %s122 = sphi 0, %s121
      %s136 = sphi 0, %s122
      %s140 = sphi 0, %s140
      %s142 = sphi 0, %s140
      %s143 = sphi 0, %s142
      %s157 = sphi 0, %s143
      %s161 = sphi 0, %s161
      %s163 = sphi 0, %s161
      %s164 = sphi 0, %s163
      %s178 = sphi 0, %s164
      %s182 = sphi 0, %s182
      %s184 = sphi 0, %s182
      %s185 = sphi 0, %s184
      %s199 = sphi 0, %s185
      %s207 = sphi 0, %s209
      %s210 = sphi 0, %s207
      %s211 = sphi 0, %s210
      %s227 = sphi 0, %s211
    $region4: #{tpu_custom_call.1} parent=1 // loop_header_branch
      %27 = sbr.rel (%p25) target = $region8
    $region5: #{tpu_custom_call.1} parent=1 // loop_body
      %s29 = ssub.s32 %s24, 1
      %s30 = ssub.s32 %s24, 2
      %s37 = sadd.s32 1, %s32
      %p38 = scmp.ge.s32.totalorder %s37, 2
      %s39 = scalar_select %p38, 0, %s37
      %s40 = sadd.s32 1, %s31
      %s41 = scalar_select %p38, %s40, %s31
      %p42 = scmp.ge.s32.totalorder %s41, 2
      %s43 = scalar_select %p42, 0, %s41
      %s44 = ssub.s32 %s31, %s43
      %s45 = ssub.s32 %s32, %s39
      %s46 = sor.u32 %s44, %s45
      %p47 = scmp.eq.s32.totalorder %s46, 0
      %s49 = sadd.s32 %s48, 1
      %s50 = scalar_select %p47, %s48, %s49
      %p53 = pneg %p47
      %p54 = scmp.eq.s32.totalorder %s24, 3
      %p55 = por %p53, %p54
      %p56 = scmp.ne.s32.totalorder %s48, %s51
      %p57 = scmp.eq.s32.totalorder %s24, 0
      %p58 = por %p56, %p57
      %p59 = scmp.ne.s32.totalorder %s48, %s51
      %p60 = scmp.eq.s32.totalorder %s29, 3
      %p61 = por %p59, %p60
      %p62 = scmp.ne.s32.totalorder %s51, %s52
      %p63 = scmp.eq.s32.totalorder %s29, 0
      %p64 = por %p62, %p63
      %p65 = scmp.ne.s32.totalorder %s51, %s52
      %p66 = scmp.eq.s32.totalorder %s30, 3
      %p67 = por %p65, %p66
      %p69 = scmp.ne.s32.totalorder %s52, %s68
      %p70 = scmp.eq.s32.totalorder %s30, 0
      %p71 = por %p69, %p70
      %s72 = ssub.s32 %s31, %s43
      %p73 = scmp.eq.s32.totalorder %s72, 0
      %s75 = sadd.s32 %s74, 1
      %s76 = scalar_select %p73, %s74, %s75
      %p79 = pneg %p73
      %p80 = scmp.eq.s32.totalorder %s24, 3
      %p81 = por %p79, %p80
      %p82 = scmp.ne.s32.totalorder %s74, %s77
      %p83 = scmp.eq.s32.totalorder %s24, 0
      %p84 = por %p82, %p83
      %p85 = scmp.ne.s32.totalorder %s74, %s77
      %p86 = scmp.eq.s32.totalorder %s29, 3
      %p87 = por %p85, %p86
      %p88 = scmp.ne.s32.totalorder %s77, %s78
      %p89 = scmp.eq.s32.totalorder %s29, 0
      %p90 = por %p88, %p89
      %p91 = scmp.ne.s32.totalorder %s77, %s78
      %p92 = scmp.eq.s32.totalorder %s30, 3
      %p93 = por %p91, %p92
      %p95 = scmp.ne.s32.totalorder %s78, %s94
      %p96 = scmp.eq.s32.totalorder %s30, 0
      %p97 = por %p95, %p96
      %s99 = sadd.s32 %s98, 1
      %p102 = scmp.eq.s32.totalorder %s24, 3
      %p103 = scmp.ne.s32.totalorder %s98, %s100
      %p104 = scmp.eq.s32.totalorder %s24, 0
      %p105 = por %p103, %p104
      %p106 = scmp.ne.s32.totalorder %s98, %s100
      %p107 = scmp.eq.s32.totalorder %s29, 3
      %p108 = por %p106, %p107
      %p109 = scmp.ne.s32.totalorder %s100, %s101
      %p110 = scmp.eq.s32.totalorder %s29, 0
      %p111 = por %p109, %p110
      %p112 = scmp.ne.s32.totalorder %s100, %s101
      %p113 = scmp.eq.s32.totalorder %s30, 3
      %p114 = por %p112, %p113
      %p116 = scmp.ne.s32.totalorder %s101, %s115
      %p117 = scmp.eq.s32.totalorder %s30, 0
      %p118 = por %p116, %p117
      %s120 = sadd.s32 %s119, 1
      %p123 = scmp.eq.s32.totalorder %s24, 3
      %p124 = scmp.ne.s32.totalorder %s119, %s121
      %p125 = scmp.eq.s32.totalorder %s24, 0
      %p126 = por %p124, %p125
      %p127 = scmp.ne.s32.totalorder %s119, %s121
      %p128 = scmp.eq.s32.totalorder %s29, 3
      %p129 = por %p127, %p128
      %p130 = scmp.ne.s32.totalorder %s121, %s122
      %p131 = scmp.eq.s32.totalorder %s29, 0
      %p132 = por %p130, %p131
      %p133 = scmp.ne.s32.totalorder %s121, %s122
      %p134 = scmp.eq.s32.totalorder %s30, 3
      %p135 = por %p133, %p134
      %p137 = scmp.ne.s32.totalorder %s122, %s136
      %p138 = scmp.eq.s32.totalorder %s30, 0
      %p139 = por %p137, %p138
      %s141 = sadd.s32 %s140, 1
      %p144 = scmp.eq.s32.totalorder %s24, 3
      %p145 = scmp.ne.s32.totalorder %s140, %s142
      %p146 = scmp.eq.s32.totalorder %s24, 0
      %p147 = por %p145, %p146
      %p148 = scmp.ne.s32.totalorder %s140, %s142
      %p149 = scmp.eq.s32.totalorder %s29, 3
      %p150 = por %p148, %p149
      %p151 = scmp.ne.s32.totalorder %s142, %s143
      %p152 = scmp.eq.s32.totalorder %s29, 0
      %p153 = por %p151, %p152
      %p154 = scmp.ne.s32.totalorder %s142, %s143
      %p155 = scmp.eq.s32.totalorder %s30, 3
      %p156 = por %p154, %p155
      %p158 = scmp.ne.s32.totalorder %s143, %s157
      %p159 = scmp.eq.s32.totalorder %s30, 0
      %p160 = por %p158, %p159
      %s162 = sadd.s32 %s161, 1
      %p165 = scmp.eq.s32.totalorder %s24, 3
      %p166 = scmp.ne.s32.totalorder %s161, %s163
      %p167 = scmp.eq.s32.totalorder %s24, 0
      %p168 = por %p166, %p167
      %p169 = scmp.ne.s32.totalorder %s161, %s163
      %p170 = scmp.eq.s32.totalorder %s29, 3
      %p171 = por %p169, %p170
      %p172 = scmp.ne.s32.totalorder %s163, %s164
      %p173 = scmp.eq.s32.totalorder %s29, 0
      %p174 = por %p172, %p173
      %p175 = scmp.ne.s32.totalorder %s163, %s164
      %p176 = scmp.eq.s32.totalorder %s30, 3
      %p177 = por %p175, %p176
      %p179 = scmp.ne.s32.totalorder %s164, %s178
      %p180 = scmp.eq.s32.totalorder %s30, 0
      %p181 = por %p179, %p180
      %s183 = sadd.s32 %s182, 1
      %p186 = scmp.eq.s32.totalorder %s24, 3
      %p187 = scmp.ne.s32.totalorder %s182, %s184
      %p188 = scmp.eq.s32.totalorder %s24, 0
      %p189 = por %p187, %p188
      %p190 = scmp.ne.s32.totalorder %s182, %s184
      %p191 = scmp.eq.s32.totalorder %s29, 3
      %p192 = por %p190, %p191
      %p193 = scmp.ne.s32.totalorder %s184, %s185
      %p194 = scmp.eq.s32.totalorder %s29, 0
      %p195 = por %p193, %p194
      %p196 = scmp.ne.s32.totalorder %s184, %s185
      %p197 = scmp.eq.s32.totalorder %s30, 3
      %p198 = por %p196, %p197
      %p200 = scmp.ne.s32.totalorder %s185, %s199
      %p201 = scmp.eq.s32.totalorder %s30, 0
      %p202 = por %p200, %p201
      %s203 = ssub.s32 %s31, %s43
      %s204 = ssub.s32 %s32, %s39
      %s205 = sor.u32 %s203, %s204
      %p206 = scmp.eq.s32.totalorder %s205, 0
      %s208 = sadd.s32 %s207, 1
      %s209 = scalar_select %p206, %s207, %s208
      %p212 = pneg %p206
      %p213 = scmp.eq.s32.totalorder %s24, 3
      %p214 = por %p212, %p213
      %p215 = scmp.ne.s32.totalorder %s207, %s210
      %p216 = scmp.eq.s32.totalorder %s24, 0
      %p217 = por %p215, %p216
      %p218 = scmp.ne.s32.totalorder %s207, %s210
      %p219 = scmp.eq.s32.totalorder %s29, 3
      %p220 = por %p218, %p219
      %p221 = scmp.ne.s32.totalorder %s210, %s211
      %p222 = scmp.eq.s32.totalorder %s29, 0
      %p223 = por %p221, %p222
      %p224 = scmp.ne.s32.totalorder %s210, %s211
      %p225 = scmp.eq.s32.totalorder %s30, 3
      %p226 = por %p224, %p225
      %p228 = scmp.ne.s32.totalorder %s211, %s227
      %p229 = scmp.eq.s32.totalorder %s30, 0
      %p230 = por %p228, %p229
      %p231 = scmp.le.s32.totalorder 1, %s24
      %p232 = scmp.lt.s32.totalorder %s24, 5
      %p233 = pnand %p231, %p232
      %p234 = pneg %p233
      // Predicated region
      $region9: #{tpu_custom_call.1} parent=5 // pred_check
        _
      $region10: #{tpu_custom_call.1} parent=5 // pred_check_branch
        %236 = sbr.rel (%p233) target = $region12
      $region11: #{tpu_custom_call.1} parent=5 // pred_region
        %s237 = ssub.s32 %s24, 1
        // Predicated region
        $region13: #{tpu_custom_call.1} parent=11 // pred_check
          %p238 = pneg %p111
        $region14: #{tpu_custom_call.1} parent=11 // pred_check_branch
          %240 = sbr.rel (%p238) target = $region16
        $region15: #{tpu_custom_call.1} parent=11 // pred_region
          %242 = vsyncadd [#allocation8], 0
          %s243 = sshll.u32 %s2, 4
          %s244 = int_to_ptr.hbm [resolvable:$true] %s243
          %s245 = sshll.u32 [#allocation9], 4
          %s246 = int_to_ptr.vmem [resolvable:$true] %s245
          %251 = dma.hbm_to_vmem [thread:$0]  %s244, 512, %s246, [#allocation8], 128, 128, 8
        $region16: #{tpu_custom_call.1} parent=11 // pred_fallthru
          _
        // Predicated region
        $region17: #{tpu_custom_call.1} parent=11 // pred_check
          %p252 = pneg %p132
        $region18: #{tpu_custom_call.1} parent=11 // pred_check_branch
          %254 = sbr.rel (%p252) target = $region20
        $region19: #{tpu_custom_call.1} parent=11 // pred_region
          %256 = vsyncadd [#allocation11], 0
          %s257 = sshll.u32 %s3, 4
          %s258 = int_to_ptr.hbm [resolvable:$true] %s257
          %s259 = sshll.u32 [#allocation10], 4
          %s260 = int_to_ptr.vmem [resolvable:$true] %s259
          %265 = dma.hbm_to_vmem [thread:$0]  %s258, 512, %s260, [#allocation11], 128, 128, 8
        $region20: #{tpu_custom_call.1} parent=11 // pred_fallthru
          _
        // Predicated region
        $region21: #{tpu_custom_call.1} parent=11 // pred_check
          %p266 = pneg %p153
        $region22: #{tpu_custom_call.1} parent=11 // pred_check_branch
          %268 = sbr.rel (%p266) target = $region24
        $region23: #{tpu_custom_call.1} parent=11 // pred_region
          %270 = vsyncadd [#allocation11], 0
          %s271 = sshll.u32 %s4, 4
          %s272 = int_to_ptr.hbm [resolvable:$true] %s271
          %s273 = sshll.u32 [#allocation12], 4
          %s274 = int_to_ptr.vmem [resolvable:$true] %s273
          %279 = dma.hbm_to_vmem [thread:$0]  %s272, 512, %s274, [#allocation11], 128, 128, 8
        $region24: #{tpu_custom_call.1} parent=11 // pred_fallthru
          _
        // Predicated region
        $region25: #{tpu_custom_call.1} parent=11 // pred_check
          %p280 = pneg %p174
        $region26: #{tpu_custom_call.1} parent=11 // pred_check_branch
          %282 = sbr.rel (%p280) target = $region28
        $region27: #{tpu_custom_call.1} parent=11 // pred_region
          %284 = vsyncadd [#allocation14], 0
          %s285 = sshll.u32 %s5, 4
          %s286 = int_to_ptr.hbm [resolvable:$true] %s285
          %s287 = sshll.u32 [#allocation13], 4
          %s288 = int_to_ptr.vmem [resolvable:$true] %s287
          %293 = dma.hbm_to_vmem [thread:$0]  %s286, 512, %s288, [#allocation14], 128, 128, 8
        $region28: #{tpu_custom_call.1} parent=11 // pred_fallthru
          _
        // Predicated region
        $region29: #{tpu_custom_call.1} parent=11 // pred_check
          %p294 = pneg %p195
        $region30: #{tpu_custom_call.1} parent=11 // pred_check_branch
          %296 = sbr.rel (%p294) target = $region32
        $region31: #{tpu_custom_call.1} parent=11 // pred_region
          _
        $region32: #{tpu_custom_call.1} parent=11 // pred_fallthru
          _
      $region12: #{tpu_custom_call.1} parent=5 // pred_fallthru
        _
      %p297 = scmp.lt.s32.totalorder %s24, 4
      // Predicated region
      $region33: #{tpu_custom_call.1} parent=5 // pred_check
        %p298 = pneg %p297
      $region34: #{tpu_custom_call.1} parent=5 // pred_check_branch
        %300 = sbr.rel (%p298) target = $region36
      $region35: #{tpu_custom_call.1} parent=5 // pred_region
        // Predicated region
        $region37: #{tpu_custom_call.1} parent=35 // pred_check
          %p301 = pneg %p58
        $region38: #{tpu_custom_call.1} parent=35 // pred_check_branch
          %303 = sbr.rel (%p301) target = $region40
        $region39: #{tpu_custom_call.1} parent=35 // pred_region
          %s304 = sand.u32 %s48, 1
          %s305 = scalar_lea.sflag [#allocation5], %s304
          %s306 = sand.u32 %s48, 1
          %s307 = smul.addr %s306, 8
          %s308 = scalar_lea.vmem [#allocation4], %s307
          %310 = vsyncadd %s305, 0
          %s311 = smul.addr %s31, 2
          %s312 = sadd.s32 %s32, %s311
          %s313 = smul.addr %s312, 8
          %s314 = scalar_lea.hbm %s0, %s313
          %s316 = sshll.u32 %s314, 4
          %s317 = int_to_ptr.hbm [resolvable:$true] %s316
          %s318 = sshll.u32 %s308, 4
          %s319 = int_to_ptr.vmem [resolvable:$true] %s318
          %321 = dma.hbm_to_vmem [thread:$0]  %s317, 128, %s319, %s305
        $region40: #{tpu_custom_call.1} parent=35 // pred_fallthru
          _
        // Predicated region
        $region41: #{tpu_custom_call.1} parent=35 // pred_check
          %p322 = pneg %p84
        $region42: #{tpu_custom_call.1} parent=35 // pred_check_branch
          %324 = sbr.rel (%p322) target = $region44
        $region43: #{tpu_custom_call.1} parent=35 // pred_region
          %s325 = sand.u32 %s24, 1
          %s326 = scalar_lea.sflag [#allocation8], %s325
          %s327 = sand.u32 %s74, 1
          %s328 = smul.addr %s327, 16
          %s329 = scalar_lea.vmem [#allocation7], %s328
          %331 = vsyncadd %s326, 0
          %s332 = smul.addr %s31, 2
          %s333 = smul.addr %s332, 8
          %s334 = scalar_lea.hbm %s1, %s333
          %s335 = sshll.u32 %s334, 4
          %s336 = int_to_ptr.hbm [resolvable:$true] %s335
          %s337 = sshll.u32 %s329, 4
          %s338 = int_to_ptr.vmem [resolvable:$true] %s337
          %343 = dma.hbm_to_vmem [thread:$0]  %s336, 256, %s338, %s326, 128, 128, 8
        $region44: #{tpu_custom_call.1} parent=35 // pred_fallthru
          _
      $region36: #{tpu_custom_call.1} parent=5 // pred_fallthru
        _
      %p344 = scmp.le.s32.totalorder 1, %s24
      %p345 = scmp.lt.s32.totalorder %s24, 5
      %p346 = pnand %p344, %p345
      %p347 = pneg %p346
      // Predicated region
      $region45: #{tpu_custom_call.1} parent=5 // pred_check
        _
      $region46: #{tpu_custom_call.1} parent=5 // pred_check_branch
        %349 = sbr.rel (%p346) target = $region48
      $region47: #{tpu_custom_call.1} parent=5 // pred_region
        %s350 = ssub.s32 %s24, 1
        %s351 = sand.u32 %s51, 1
        %s352 = scalar_lea.sflag [#allocation5], %s351
        %s353 = sand.u32 %s51, 1
        %s354 = smul.addr %s353, 8
        %s355 = scalar_lea.vmem [#allocation4], %s354
        // Predicated region
        $region49: #{tpu_custom_call.1} parent=47 // pred_check
          %p356 = pneg %p64
        $region50: #{tpu_custom_call.1} parent=47 // pred_check_branch
          %358 = sbr.rel (%p356) target = $region52
        $region51: #{tpu_custom_call.1} parent=47 // pred_region
          %360 = dma.done %s352, 128
        $region52: #{tpu_custom_call.1} parent=47 // pred_fallthru
          _
        %s361 = sand.u32 %s29, 1
        %s362 = scalar_lea.sflag [#allocation8], %s361
        %s363 = sand.u32 %s77, 1
        %s364 = smul.addr %s363, 16
        %s365 = scalar_lea.vmem [#allocation7], %s364
        // Predicated region
        $region53: #{tpu_custom_call.1} parent=47 // pred_check
          %p366 = pneg %p90
        $region54: #{tpu_custom_call.1} parent=47 // pred_check_branch
          %368 = sbr.rel (%p366) target = $region56
        $region55: #{tpu_custom_call.1} parent=47 // pred_region
          %370 = dma.done %s362, 256
        $region56: #{tpu_custom_call.1} parent=47 // pred_fallthru
          _
        // Predicated region
        $region57: #{tpu_custom_call.1} parent=47 // pred_check
          %p371 = pneg %p111
        $region58: #{tpu_custom_call.1} parent=47 // pred_check_branch
          %373 = sbr.rel (%p371) target = $region60
        $region59: #{tpu_custom_call.1} parent=47 // pred_region
          %375 = dma.done [#allocation8], 512
        $region60: #{tpu_custom_call.1} parent=47 // pred_fallthru
          _
        // Predicated region
        $region61: #{tpu_custom_call.1} parent=47 // pred_check
          %p376 = pneg %p132
        $region62: #{tpu_custom_call.1} parent=47 // pred_check_branch
          %378 = sbr.rel (%p376) target = $region64
        $region63: #{tpu_custom_call.1} parent=47 // pred_region
          %380 = dma.done [#allocation11], 512
        $region64: #{tpu_custom_call.1} parent=47 // pred_fallthru
          _
        // Predicated region
        $region65: #{tpu_custom_call.1} parent=47 // pred_check
          %p381 = pneg %p153
        $region66: #{tpu_custom_call.1} parent=47 // pred_check_branch
          %383 = sbr.rel (%p381) target = $region68
        $region67: #{tpu_custom_call.1} parent=47 // pred_region
          %385 = dma.done [#allocation11], 512
        $region68: #{tpu_custom_call.1} parent=47 // pred_fallthru
          _
        // Predicated region
        $region69: #{tpu_custom_call.1} parent=47 // pred_check
          %p386 = pneg %p174
        $region70: #{tpu_custom_call.1} parent=47 // pred_check_branch
          %388 = sbr.rel (%p386) target = $region72
        $region71: #{tpu_custom_call.1} parent=47 // pred_region
          %390 = dma.done [#allocation14], 512
        $region72: #{tpu_custom_call.1} parent=47 // pred_fallthru
          _
        %s391 = sand.u32 %s51, 1
        %s392 = scalar_lea.sflag [#allocation5], %s391
        %s393 = sand.u32 %s51, 1
        %s394 = smul.addr %s393, 8
        %s395 = scalar_lea.vmem [#allocation4], %s394
        %p396 = pneg %p64
        %p397 = pneg %p61
        %s398 = sand.u32 %s29, 1
        %s399 = scalar_lea.sflag [#allocation8], %s398
        %s400 = sand.u32 %s77, 1
        %s401 = smul.addr %s400, 16
        %s402 = scalar_lea.vmem [#allocation7], %s401
        %p403 = pneg %p90
        %p404 = pneg %p87
        %p405 = pneg %p111
        %p406 = pneg %p108
        %p407 = pneg %p132
        %p408 = pneg %p129
        %p409 = pneg %p153
        %p410 = pneg %p150
        %p411 = pneg %p174
        %p412 = pneg %p171
        %p413 = pneg %p195
        %p414 = pneg %p192
        %p415 = pneg %p223
        %p416 = pneg %p220
        %s417 = sand.u32 %s210, 1
        %s418 = scalar_lea.sflag [#allocation6], %s417
        %s419 = sand.u32 %s210, 1
        %s420 = smul.addr %s419, 8
        %s421 = scalar_lea.vmem [#allocation15], %s420
        %p422 = scmp.eq.s32.totalorder %s34, 0
        // Predicated region
        $region73: #{tpu_custom_call.1} parent=47 // pred_check
          %p423 = pneg %p422
        $region74: #{tpu_custom_call.1} parent=47 // pred_check_branch
          %425 = sbr.rel (%p423) target = $region76
        $region75: #{tpu_custom_call.1} parent=47 // pred_region
          %v426 = vld [vmem:[%s365] sm:$0xff]
          %v427 = vld [vmem:[%s365 + $0x8] sm:$0xff]
          %v428 = vld [vmem:[#allocation10] sm:$0xff]
          %v429 = vld [vmem:[#allocation10 + $0x8] sm:$0xff]
          %v430 = vld [vmem:[#allocation10 + $0x10] sm:$0xff]
          %v431 = vld [vmem:[#allocation10 + $0x18] sm:$0xff]
          %vm432 = vcmask 261120
          %v434 = vsel %vm432, %v426, 0
          %v437 = vsel %vm432, %v427, 0
          %439 = vmatpush.msra.mxu0 0.0
          %440 = vmatpush.msra.mxu0 0.0
          %441 = vmatpush.msra.mxu0 0.0
          %442 = vmatpush.msra.mxu0 0.0
          %443 = vmatpush.msra.mxu0 0.0
          %444 = vmatpush.msra.mxu0 0.0
          %445 = vmatpush.msra.mxu0 0.0
          %446 = vmatpush.msra.mxu0 0.0
          %447 = vmatpush.msra.mxu0 0.0
          %448 = vmatpush.msra.mxu0 0.0
          %449 = vmatpush.msra.mxu0 0.0
          %450 = vmatpush.msra.mxu0 0.0
          %451 = vmatpush.msra.mxu0 %v431
          %452 = vmatpush.msra.mxu0 %v430
          %453 = vmatpush.msra.mxu0 %v429
          %454 = vmatpush.msra.mxu0 %v428
          %455 = vmatmul.f32.gmra.mxu0 %v434
          %v456 = vpop.f32.mrf.mxu0
          %v457 = vadd.f32 0.0, %v456
          %458 = vmatmul.f32.gmra.mxu0 %v437
          %v459 = vpop.f32.mrf.mxu0
          %v460 = vadd.f32 0.0, %v459
          %461 = vdwg.mxu0
          %v462 = vld [vmem:[#allocation12] sm:$0xff]
          %v463 = vld [vmem:[#allocation12 + $0x8] sm:$0xff]
          %v464 = vld [vmem:[#allocation12 + $0x10] sm:$0xff]
          %v465 = vld [vmem:[#allocation12 + $0x18] sm:$0xff]
          %466 = vmatpush.msra.mxu0 0.0
          %467 = vmatpush.msra.mxu0 0.0
          %468 = vmatpush.msra.mxu0 0.0
          %469 = vmatpush.msra.mxu0 0.0
          %470 = vmatpush.msra.mxu0 0.0
          %471 = vmatpush.msra.mxu0 0.0
          %472 = vmatpush.msra.mxu0 0.0
          %473 = vmatpush.msra.mxu0 0.0
          %474 = vmatpush.msra.mxu0 0.0
          %475 = vmatpush.msra.mxu0 0.0
          %476 = vmatpush.msra.mxu0 0.0
          %477 = vmatpush.msra.mxu0 0.0
          %478 = vmatpush.msra.mxu0 %v465
          %479 = vmatpush.msra.mxu0 %v464
          %480 = vmatpush.msra.mxu0 %v463
          %481 = vmatpush.msra.mxu0 %v462
          %482 = vmatmul.f32.gmra.mxu0 %v434
          %v483 = vpop.f32.mrf.mxu0
          %v484 = vadd.f32 0.0, %v483
          %485 = vmatmul.f32.gmra.mxu0 %v437
          %v486 = vpop.f32.mrf.mxu0
          %v487 = vadd.f32 0.0, %v486
          %488 = vdwg.mxu0
          %491 = vrot.lane.b32.xlu0 %v457, 112
          %v492 = vpop.permute.xlu0 %491
          %493 = vrot.lane.b32.xlu0 %v460, 112
          %v494 = vpop.permute.xlu0 %493
          %v497 = vrot.slane %v457, 4
          %vm498 = vcmask 1047556
          %v499 = vsel %vm498, 0.0, %v497
          %v501 = vunpack.c.l.s4 1983009808
          %v502 = vunpack.c.0.s8 %v501
          %v503 = vperm.slane %v457, %v502
          %v505 = vunpack.c.l.s4 1983009808
          %v506 = vunpack.c.0.s8 %v505
          %v507 = vperm.slane %v499, %v506
          %v508 = vrot.slane %v492, 4
          %v509 = vsel %vm498, 0.0, %v508
          %v511 = vunpack.c.l.s4 1983009808
          %v512 = vunpack.c.0.s8 %v511
          %v513 = vperm.slane %v492, %v512
          %v515 = vunpack.c.l.s4 1983009808
          %v516 = vunpack.c.0.s8 %v515
          %v517 = vperm.slane %v509, %v516
          %v518 = vrot.slane %v513, 4
          %v519 = vsel %vm498, %v518, %v503
          %v520 = vrot.slane %v503, 4
          %v521 = vsel %vm498, %v513, %v520
          %v523 = vunpack.c.l.s4 1934713408
          %v524 = vunpack.c.0.s8 %v523
          %v525 = vperm.slane %v519, %v524
          %v527 = vunpack.c.l.s4 1934713408
          %v528 = vunpack.c.0.s8 %v527
          %v529 = vperm.slane %v521, %v528
          %v530 = vrot.slane %v517, 4
          %v531 = vsel %vm498, %v530, %v507
          %v532 = vrot.slane %v507, 4
          %v533 = vsel %vm498, %v517, %v532
          %v535 = vunpack.c.l.s4 1934713408
          %v536 = vunpack.c.0.s8 %v535
          %v537 = vperm.slane %v531, %v536
          %v539 = vunpack.c.l.s4 1934713408
          %v540 = vunpack.c.0.s8 %v539
          %v541 = vperm.slane %v533, %v540
          %v542 = vrot.slane %v525, 4
          %v543 = vsel %vm498, 0.0, %v542
          %v544 = vrot.slane %v529, 4
          %v545 = vsel %vm498, 0.0, %v544
          %v546 = vrot.slane %v537, 4
          %v547 = vsel %vm498, 0.0, %v546
          %v548 = vrot.slane %v541, 4
          %v549 = vsel %vm498, 0.0, %v548
          %v550 = vrot.slane %v460, 4
          %v551 = vsel %vm498, 0.0, %v550
          %v553 = vunpack.c.l.s4 1983009808
          %v554 = vunpack.c.0.s8 %v553
          %v555 = vperm.slane %v460, %v554
          %v557 = vunpack.c.l.s4 1983009808
          %v558 = vunpack.c.0.s8 %v557
          %v559 = vperm.slane %v551, %v558
          %v560 = vrot.slane %v494, 4
          %v561 = vsel %vm498, 0.0, %v560
          %v563 = vunpack.c.l.s4 1983009808
          %v564 = vunpack.c.0.s8 %v563
          %v565 = vperm.slane %v494, %v564
          %v567 = vunpack.c.l.s4 1983009808
          %v568 = vunpack.c.0.s8 %v567
          %v569 = vperm.slane %v561, %v568
          %v570 = vrot.slane %v565, 4
          %v571 = vsel %vm498, %v570, %v555
          %v572 = vrot.slane %v555, 4
          %v573 = vsel %vm498, %v565, %v572
          %v575 = vunpack.c.l.s4 1934713408
          %v576 = vunpack.c.0.s8 %v575
          %v577 = vperm.slane %v571, %v576
          %v579 = vunpack.c.l.s4 1934713408
          %v580 = vunpack.c.0.s8 %v579
          %v581 = vperm.slane %v573, %v580
          %v582 = vrot.slane %v569, 4
          %v583 = vsel %vm498, %v582, %v559
          %v584 = vrot.slane %v559, 4
          %v585 = vsel %vm498, %v569, %v584
          %v587 = vunpack.c.l.s4 1934713408
          %v588 = vunpack.c.0.s8 %v587
          %v589 = vperm.slane %v583, %v588
          %v591 = vunpack.c.l.s4 1934713408
          %v592 = vunpack.c.0.s8 %v591
          %v593 = vperm.slane %v585, %v592
          %v594 = vrot.slane %v577, 4
          %v595 = vsel %vm498, 0.0, %v594
          %v596 = vrot.slane %v581, 4
          %v597 = vsel %vm498, 0.0, %v596
          %v598 = vrot.slane %v589, 4
          %v599 = vsel %vm498, 0.0, %v598
          %v600 = vrot.slane %v593, 4
          %v601 = vsel %vm498, 0.0, %v600
          %v602 = vsel %vm498, %v544, %v525
          %v604 = vunpack.c.l.s4 1983009808
          %v605 = vunpack.c.0.s8 %v604
          %v606 = vperm.slane %v602, %v605
          %v607 = vrot.slane %v545, 4
          %v608 = vsel %vm498, %v607, %v543
          %v610 = vunpack.c.l.s4 1983009808
          %v611 = vunpack.c.0.s8 %v610
          %v612 = vperm.slane %v608, %v611
          %v613 = vsel %vm498, %v548, %v537
          %v615 = vunpack.c.l.s4 1983009808
          %v616 = vunpack.c.0.s8 %v615
          %v617 = vperm.slane %v613, %v616
          %v618 = vrot.slane %v549, 4
          %v619 = vsel %vm498, %v618, %v547
          %v621 = vunpack.c.l.s4 1983009808
          %v622 = vunpack.c.0.s8 %v621
          %v623 = vperm.slane %v619, %v622
          %v624 = vrot.slane %v612, 4
          %v625 = vsel %vm498, %v624, %v606
          %v627 = vunpack.c.l.s4 1934713408
          %v628 = vunpack.c.0.s8 %v627
          %v629 = vperm.slane %v625, %v628
          %v630 = vrot.slane %v623, 4
          %v631 = vsel %vm498, %v630, %v617
          %v633 = vunpack.c.l.s4 1934713408
          %v634 = vunpack.c.0.s8 %v633
          %v635 = vperm.slane %v631, %v634
          %v636 = vrot.slane %v635, 4
          %v637 = vsel %vm498, %v636, %v629
          %v638 = vrot.slane %v629, 4
          %v639 = vsel %vm498, %v635, %v638
          %v640 = vsel %vm498, %v596, %v577
          %v642 = vunpack.c.l.s4 1983009808
          %v643 = vunpack.c.0.s8 %v642
          %v644 = vperm.slane %v640, %v643
          %v645 = vrot.slane %v597, 4
          %v646 = vsel %vm498, %v645, %v595
          %v648 = vunpack.c.l.s4 1983009808
          %v649 = vunpack.c.0.s8 %v648
          %v650 = vperm.slane %v646, %v649
          %v651 = vsel %vm498, %v600, %v589
          %v653 = vunpack.c.l.s4 1983009808
          %v654 = vunpack.c.0.s8 %v653
          %v655 = vperm.slane %v651, %v654
          %v656 = vrot.slane %v601, 4
          %v657 = vsel %vm498, %v656, %v599
          %v659 = vunpack.c.l.s4 1983009808
          %v660 = vunpack.c.0.s8 %v659
          %v661 = vperm.slane %v657, %v660
          %v662 = vrot.slane %v650, 4
          %v663 = vsel %vm498, %v662, %v644
          %v665 = vunpack.c.l.s4 1934713408
          %v666 = vunpack.c.0.s8 %v665
          %v667 = vperm.slane %v663, %v666
          %v668 = vrot.slane %v661, 4
          %v669 = vsel %vm498, %v668, %v655
          %v671 = vunpack.c.l.s4 1934713408
          %v672 = vunpack.c.0.s8 %v671
          %v673 = vperm.slane %v669, %v672
          %v674 = vrot.slane %v673, 4
          %v675 = vsel %vm498, %v674, %v667
          %v676 = vrot.slane %v667, 4
          %v677 = vsel %vm498, %v673, %v676
          %vm678 = vcmask 130048
          %679 = vst.msk [vmem:[#allocation2] sm:$0xff] %vm678, %v637
          %680 = vst.msk [vmem:[#allocation2 + $0x8] sm:$0xff] %vm678, %v675
          %681 = vst.msk [vmem:[#allocation2 + $0x10] sm:$0xff] %vm678, %v639
          %682 = vst.msk [vmem:[#allocation2 + $0x18] sm:$0xff] %vm678, %v677
          %685 = vrot.lane.b32.xlu0 %v484, 112
          %v686 = vpop.permute.xlu0 %685
          %687 = vrot.lane.b32.xlu0 %v487, 112
          %v688 = vpop.permute.xlu0 %687
          %v691 = vrot.slane %v484, 4
          %v692 = vsel %vm498, 0.0, %v691
          %v694 = vunpack.c.l.s4 1983009808
          %v695 = vunpack.c.0.s8 %v694
          %v696 = vperm.slane %v484, %v695
          %v698 = vunpack.c.l.s4 1983009808
          %v699 = vunpack.c.0.s8 %v698
          %v700 = vperm.slane %v692, %v699
          %v701 = vrot.slane %v686, 4
          %v702 = vsel %vm498, 0.0, %v701
          %v704 = vunpack.c.l.s4 1983009808
          %v705 = vunpack.c.0.s8 %v704
          %v706 = vperm.slane %v686, %v705
          %v708 = vunpack.c.l.s4 1983009808
          %v709 = vunpack.c.0.s8 %v708
          %v710 = vperm.slane %v702, %v709
          %v711 = vrot.slane %v706, 4
          %v712 = vsel %vm498, %v711, %v696
          %v713 = vrot.slane %v696, 4
          %v714 = vsel %vm498, %v706, %v713
          %v716 = vunpack.c.l.s4 1934713408
          %v717 = vunpack.c.0.s8 %v716
          %v718 = vperm.slane %v712, %v717
          %v720 = vunpack.c.l.s4 1934713408
          %v721 = vunpack.c.0.s8 %v720
          %v722 = vperm.slane %v714, %v721
          %v723 = vrot.slane %v710, 4
          %v724 = vsel %vm498, %v723, %v700
          %v725 = vrot.slane %v700, 4
          %v726 = vsel %vm498, %v710, %v725
          %v728 = vunpack.c.l.s4 1934713408
          %v729 = vunpack.c.0.s8 %v728
          %v730 = vperm.slane %v724, %v729
          %v732 = vunpack.c.l.s4 1934713408
          %v733 = vunpack.c.0.s8 %v732
          %v734 = vperm.slane %v726, %v733
          %v735 = vrot.slane %v718, 4
          %v736 = vsel %vm498, 0.0, %v735
          %v737 = vrot.slane %v722, 4
          %v738 = vsel %vm498, 0.0, %v737
          %v739 = vrot.slane %v730, 4
          %v740 = vsel %vm498, 0.0, %v739
          %v741 = vrot.slane %v734, 4
          %v742 = vsel %vm498, 0.0, %v741
          %v743 = vrot.slane %v487, 4
          %v744 = vsel %vm498, 0.0, %v743
          %v746 = vunpack.c.l.s4 1983009808
          %v747 = vunpack.c.0.s8 %v746
          %v748 = vperm.slane %v487, %v747
          %v750 = vunpack.c.l.s4 1983009808
          %v751 = vunpack.c.0.s8 %v750
          %v752 = vperm.slane %v744, %v751
          %v753 = vrot.slane %v688, 4
          %v754 = vsel %vm498, 0.0, %v753
          %v756 = vunpack.c.l.s4 1983009808
          %v757 = vunpack.c.0.s8 %v756
          %v758 = vperm.slane %v688, %v757
          %v760 = vunpack.c.l.s4 1983009808
          %v761 = vunpack.c.0.s8 %v760
          %v762 = vperm.slane %v754, %v761
          %v763 = vrot.slane %v758, 4
          %v764 = vsel %vm498, %v763, %v748
          %v765 = vrot.slane %v748, 4
          %v766 = vsel %vm498, %v758, %v765
          %v768 = vunpack.c.l.s4 1934713408
          %v769 = vunpack.c.0.s8 %v768
          %v770 = vperm.slane %v764, %v769
          %v772 = vunpack.c.l.s4 1934713408
          %v773 = vunpack.c.0.s8 %v772
          %v774 = vperm.slane %v766, %v773
          %v775 = vrot.slane %v762, 4
          %v776 = vsel %vm498, %v775, %v752
          %v777 = vrot.slane %v752, 4
          %v778 = vsel %vm498, %v762, %v777
          %v780 = vunpack.c.l.s4 1934713408
          %v781 = vunpack.c.0.s8 %v780
          %v782 = vperm.slane %v776, %v781
          %v784 = vunpack.c.l.s4 1934713408
          %v785 = vunpack.c.0.s8 %v784
          %v786 = vperm.slane %v778, %v785
          %v787 = vrot.slane %v770, 4
          %v788 = vsel %vm498, 0.0, %v787
          %v789 = vrot.slane %v774, 4
          %v790 = vsel %vm498, 0.0, %v789
          %v791 = vrot.slane %v782, 4
          %v792 = vsel %vm498, 0.0, %v791
          %v793 = vrot.slane %v786, 4
          %v794 = vsel %vm498, 0.0, %v793
          %v795 = vsel %vm498, %v737, %v718
          %v797 = vunpack.c.l.s4 1983009808
          %v798 = vunpack.c.0.s8 %v797
          %v799 = vperm.slane %v795, %v798
          %v800 = vrot.slane %v738, 4
          %v801 = vsel %vm498, %v800, %v736
          %v803 = vunpack.c.l.s4 1983009808
          %v804 = vunpack.c.0.s8 %v803
          %v805 = vperm.slane %v801, %v804
          %v806 = vsel %vm498, %v741, %v730
          %v808 = vunpack.c.l.s4 1983009808
          %v809 = vunpack.c.0.s8 %v808
          %v810 = vperm.slane %v806, %v809
          %v811 = vrot.slane %v742, 4
          %v812 = vsel %vm498, %v811, %v740
          %v814 = vunpack.c.l.s4 1983009808
          %v815 = vunpack.c.0.s8 %v814
          %v816 = vperm.slane %v812, %v815
          %v817 = vrot.slane %v805, 4
          %v818 = vsel %vm498, %v817, %v799
          %v820 = vunpack.c.l.s4 1934713408
          %v821 = vunpack.c.0.s8 %v820
          %v822 = vperm.slane %v818, %v821
          %v823 = vrot.slane %v816, 4
          %v824 = vsel %vm498, %v823, %v810
          %v826 = vunpack.c.l.s4 1934713408
          %v827 = vunpack.c.0.s8 %v826
          %v828 = vperm.slane %v824, %v827
          %v829 = vrot.slane %v828, 4
          %v830 = vsel %vm498, %v829, %v822
          %v831 = vrot.slane %v822, 4
          %v832 = vsel %vm498, %v828, %v831
          %v833 = vsel %vm498, %v789, %v770
          %v835 = vunpack.c.l.s4 1983009808
          %v836 = vunpack.c.0.s8 %v835
          %v837 = vperm.slane %v833, %v836
          %v838 = vrot.slane %v790, 4
          %v839 = vsel %vm498, %v838, %v788
          %v841 = vunpack.c.l.s4 1983009808
          %v842 = vunpack.c.0.s8 %v841
          %v843 = vperm.slane %v839, %v842
          %v844 = vsel %vm498, %v793, %v782
          %v846 = vunpack.c.l.s4 1983009808
          %v847 = vunpack.c.0.s8 %v846
          %v848 = vperm.slane %v844, %v847
          %v849 = vrot.slane %v794, 4
          %v850 = vsel %vm498, %v849, %v792
          %v852 = vunpack.c.l.s4 1983009808
          %v853 = vunpack.c.0.s8 %v852
          %v854 = vperm.slane %v850, %v853
          %v855 = vrot.slane %v843, 4
          %v856 = vsel %vm498, %v855, %v837
          %v858 = vunpack.c.l.s4 1934713408
          %v859 = vunpack.c.0.s8 %v858
          %v860 = vperm.slane %v856, %v859
          %v861 = vrot.slane %v854, 4
          %v862 = vsel %vm498, %v861, %v848
          %v864 = vunpack.c.l.s4 1934713408
          %v865 = vunpack.c.0.s8 %v864
          %v866 = vperm.slane %v862, %v865
          %v867 = vrot.slane %v866, 4
          %v868 = vsel %vm498, %v867, %v860
          %v869 = vrot.slane %v860, 4
          %v870 = vsel %vm498, %v866, %v869
          %871 = vst.msk [vmem:[#allocation3] sm:$0xff] %vm678, %v830
          %872 = vst.msk [vmem:[#allocation3 + $0x8] sm:$0xff] %vm678, %v868
          %873 = vst.msk [vmem:[#allocation3 + $0x10] sm:$0xff] %vm678, %v832
          %874 = vst.msk [vmem:[#allocation3 + $0x18] sm:$0xff] %vm678, %v870
        $region76: #{tpu_custom_call.1} parent=47 // pred_fallthru
          _
        %v875 = vld [vmem:[%s355] sm:$0xff]
        %v876 = vld [vmem:[#allocation9] sm:$0xff]
        %v877 = vld [vmem:[#allocation9 + $0x8] sm:$0xff]
        %v878 = vld [vmem:[#allocation9 + $0x10] sm:$0xff]
        %v879 = vld [vmem:[#allocation9 + $0x18] sm:$0xff]
        %vm880 = vcmask 261120
        %v882 = vsel %vm880, %v875, 0
        %884 = vmatpush.msra.mxu0 0.0
        %885 = vmatpush.msra.mxu0 0.0
        %886 = vmatpush.msra.mxu0 0.0
        %887 = vmatpush.msra.mxu0 0.0
        %888 = vmatpush.msra.mxu0 0.0
        %889 = vmatpush.msra.mxu0 0.0
        %890 = vmatpush.msra.mxu0 0.0
        %891 = vmatpush.msra.mxu0 0.0
        %892 = vmatpush.msra.mxu0 0.0
        %893 = vmatpush.msra.mxu0 0.0
        %894 = vmatpush.msra.mxu0 0.0
        %895 = vmatpush.msra.mxu0 0.0
        %896 = vmatpush.msra.mxu0 %v879
        %897 = vmatpush.msra.mxu0 %v878
        %898 = vmatpush.msra.mxu0 %v877
        %899 = vmatpush.msra.mxu0 %v876
        %900 = vmatmul.f32.gmra.mxu0 %v882
        %v901 = vpop.f32.mrf.mxu0
        %v902 = vadd.f32 0.0, %v901
        %903 = vdwg.mxu0
        %v904 = vmul.f32 %v902, 0.25
        %906 = vrot.lane.b32.xlu0 %v904, 112
        %v907 = vpop.permute.xlu0 %906
        %v909 = vrot.slane %v904, 4
        %vm910 = vcmask 1047556
        %v911 = vsel %vm910, 0.0, %v909
        %v913 = vunpack.c.l.s4 1983009808
        %v914 = vunpack.c.0.s8 %v913
        %v915 = vperm.slane %v904, %v914
        %v917 = vunpack.c.l.s4 1983009808
        %v918 = vunpack.c.0.s8 %v917
        %v919 = vperm.slane %v911, %v918
        %v920 = vrot.slane %v907, 4
        %v921 = vsel %vm910, 0.0, %v920
        %v923 = vunpack.c.l.s4 1983009808
        %v924 = vunpack.c.0.s8 %v923
        %v925 = vperm.slane %v907, %v924
        %v927 = vunpack.c.l.s4 1983009808
        %v928 = vunpack.c.0.s8 %v927
        %v929 = vperm.slane %v921, %v928
        %v930 = vrot.slane %v925, 4
        %v931 = vsel %vm910, %v930, %v915
        %v932 = vrot.slane %v915, 4
        %v933 = vsel %vm910, %v925, %v932
        %v935 = vunpack.c.l.s4 1934713408
        %v936 = vunpack.c.0.s8 %v935
        %v937 = vperm.slane %v931, %v936
        %v939 = vunpack.c.l.s4 1934713408
        %v940 = vunpack.c.0.s8 %v939
        %v941 = vperm.slane %v933, %v940
        %v942 = vrot.slane %v929, 4
        %v943 = vsel %vm910, %v942, %v919
        %v944 = vrot.slane %v919, 4
        %v945 = vsel %vm910, %v929, %v944
        %v947 = vunpack.c.l.s4 1934713408
        %v948 = vunpack.c.0.s8 %v947
        %v949 = vperm.slane %v943, %v948
        %v951 = vunpack.c.l.s4 1934713408
        %v952 = vunpack.c.0.s8 %v951
        %v953 = vperm.slane %v945, %v952
        %v954 = vrot.slane %v937, 4
        %v955 = vsel %vm910, 0.0, %v954
        %v956 = vrot.slane %v941, 4
        %v957 = vsel %vm910, 0.0, %v956
        %v958 = vrot.slane %v949, 4
        %v959 = vsel %vm910, 0.0, %v958
        %v960 = vrot.slane %v953, 4
        %v961 = vsel %vm910, 0.0, %v960
        %v962 = vsel %vm910, %v956, %v937
        %v964 = vunpack.c.l.s4 1983009808
        %v965 = vunpack.c.0.s8 %v964
        %v966 = vperm.slane %v962, %v965
        %v967 = vrot.slane %v957, 4
        %v968 = vsel %vm910, %v967, %v955
        %v970 = vunpack.c.l.s4 1983009808
        %v971 = vunpack.c.0.s8 %v970
        %v972 = vperm.slane %v968, %v971
        %v973 = vsel %vm910, %v960, %v949
        %v975 = vunpack.c.l.s4 1983009808
        %v976 = vunpack.c.0.s8 %v975
        %v977 = vperm.slane %v973, %v976
        %v978 = vrot.slane %v961, 4
        %v979 = vsel %vm910, %v978, %v959
        %v981 = vunpack.c.l.s4 1983009808
        %v982 = vunpack.c.0.s8 %v981
        %v983 = vperm.slane %v979, %v982
        %v984 = vrot.slane %v972, 4
        %v985 = vsel %vm910, %v984, %v966
        %v987 = vunpack.c.l.s4 1934713408
        %v988 = vunpack.c.0.s8 %v987
        %v989 = vperm.slane %v985, %v988
        %v990 = vrot.slane %v983, 4
        %v991 = vsel %vm910, %v990, %v977
        %v993 = vunpack.c.l.s4 1934713408
        %v994 = vunpack.c.0.s8 %v993
        %v995 = vperm.slane %v991, %v994
        %v996 = vrot.slane %v995, 4
        %v997 = vsel %vm910, %v996, %v989
        %v998 = vrot.slane %v989, 4
        %v999 = vsel %vm910, %v995, %v998
        %v1000 = vld [vmem:[#allocation2] sm:$0xff]
        %v1001 = vld [vmem:[#allocation2 + $0x8] sm:$0xff]
        %v1002 = vld [vmem:[#allocation2 + $0x10] sm:$0xff]
        %v1003 = vld [vmem:[#allocation2 + $0x18] sm:$0xff]
        %v1004 = vld [vmem:[#allocation3] sm:$0xff]
        %v1005 = vld [vmem:[#allocation3 + $0x8] sm:$0xff]
        %v1006 = vld [vmem:[#allocation3 + $0x10] sm:$0xff]
        %v1007 = vld [vmem:[#allocation3 + $0x18] sm:$0xff]
        %vm1008 = vcmask 130048
        %v1010 = vsel %vm1008, %v997, 0
        %v1013 = vsel %vm1008, %v1000, 0
        %v1016 = vsel %vm1008, %v1001, 0
        %1018 = vmatpush.xpose.msra.mxu0 0.0
        %1019 = vmatpush.xpose.msra.mxu0 0.0
        %1020 = vmatpush.xpose.msra.mxu0 0.0
        %1021 = vmatpush.xpose.msra.mxu0 0.0
        %1022 = vmatpush.xpose.msra.mxu0 0.0
        %1023 = vmatpush.xpose.msra.mxu0 0.0
        %1024 = vmatpush.xpose.msra.mxu0 0.0
        %1025 = vmatpush.xpose.msra.mxu0 0.0
        %1026 = vmatpush.xpose.msra.mxu0 0.0
        %1027 = vmatpush.xpose.msra.mxu0 0.0
        %1028 = vmatpush.xpose.msra.mxu0 0.0
        %1029 = vmatpush.xpose.msra.mxu0 0.0
        %1030 = vmatpush.xpose.msra.mxu0 0.0
        %1031 = vmatpush.xpose.msra.mxu0 0.0
        %1032 = vmatpush.xpose.msra.mxu0 %v1016
        %1033 = vmatpush.xpose.msra.mxu0 %v1013
        %1034 = vmatmul.f32.gmra.mxu0 %v1010
        %v1035 = vpop.f32.mrf.mxu0
        %v1036 = vadd.f32 0.0, %v1035
        %1037 = vdwg.mxu0
        %v1039 = vsel %vm1008, %v999, 0
        %v1042 = vsel %vm1008, %v1002, 0
        %v1045 = vsel %vm1008, %v1003, 0
        %1047 = vmatpush.xpose.msra.mxu0 0.0
        %1048 = vmatpush.xpose.msra.mxu0 0.0
        %1049 = vmatpush.xpose.msra.mxu0 0.0
        %1050 = vmatpush.xpose.msra.mxu0 0.0
        %1051 = vmatpush.xpose.msra.mxu0 0.0
        %1052 = vmatpush.xpose.msra.mxu0 0.0
        %1053 = vmatpush.xpose.msra.mxu0 0.0
        %1054 = vmatpush.xpose.msra.mxu0 0.0
        %1055 = vmatpush.xpose.msra.mxu0 0.0
        %1056 = vmatpush.xpose.msra.mxu0 0.0
        %1057 = vmatpush.xpose.msra.mxu0 0.0
        %1058 = vmatpush.xpose.msra.mxu0 0.0
        %1059 = vmatpush.xpose.msra.mxu0 0.0
        %1060 = vmatpush.xpose.msra.mxu0 0.0
        %1061 = vmatpush.xpose.msra.mxu0 %v1045
        %1062 = vmatpush.xpose.msra.mxu0 %v1042
        %1063 = vmatmul.f32.gmra.mxu0 %v1039
        %v1064 = vpop.f32.mrf.mxu0
        %v1065 = vadd.f32 0.0, %v1064
        %1066 = vdwg.mxu0
        %v1067 = vsel %vm1008, %v1036, -inf
        %1068 = vmax.xlane.f32.xlu0 %v1067
        %v1069 = vpop.xlane.xlu0 %1068
        %v1070 = vsel %vm1008, %v1065, -inf
        %1071 = vmax.xlane.f32.xlu0 %v1070
        %v1072 = vpop.xlane.xlu0 %1071
        %v1073 = vsub.f32 %v1036, %v1069
        %v1074 = vsub.f32 %v1065, %v1072
        %v1075 = vmul.f32 %v1073, 1.442695
        %v1076 = vpow.pop %v1075
        %v1077 = vmul.f32 %v1074, 1.442695
        %v1078 = vpow.pop %v1077
        %v1079 = vsel %vm1008, %v1076, 0.0
        %1080 = vadd.xlane.f32.xlu0 %v1079
        %v1081 = vpop.xlane.xlu0 %1080
        %v1082 = vsel %vm1008, %v1078, 0.0
        %1083 = vadd.xlane.f32.xlu0 %v1082
        %v1084 = vpop.xlane.xlu0 %1083
        %v1085 = vrcp.pop %v1081
        %v1086 = vrcp.pop %v1084
        %v1087 = vmul.f32 %v1076, %v1085
        %v1088 = vmul.f32 %v1078, %v1086
        %v1090 = vsel %vm1008, %v1087, 0
        %1092 = vmatpush.msra.mxu0 0.0
        %1093 = vmatpush.msra.mxu0 0.0
        %1094 = vmatpush.msra.mxu0 0.0
        %1095 = vmatpush.msra.mxu0 0.0
        %1096 = vmatpush.msra.mxu0 0.0
        %1097 = vmatpush.msra.mxu0 0.0
        %1098 = vmatpush.msra.mxu0 0.0
        %1099 = vmatpush.msra.mxu0 0.0
        %1100 = vmatpush.msra.mxu0 0.0
        %1101 = vmatpush.msra.mxu0 0.0
        %1102 = vmatpush.msra.mxu0 0.0
        %1103 = vmatpush.msra.mxu0 0.0
        %1104 = vmatpush.msra.mxu0 0.0
        %1105 = vmatpush.msra.mxu0 0.0
        %1106 = vmatpush.msra.mxu0 %v1005
        %1107 = vmatpush.msra.mxu0 %v1004
        %1108 = vmatmul.f32.gmra.mxu0 %v1090
        %v1109 = vpop.f32.mrf.mxu0
        %v1110 = vadd.f32 0.0, %v1109
        %1111 = vdwg.mxu0
        %v1113 = vsel %vm1008, %v1088, 0
        %1115 = vmatpush.msra.mxu0 0.0
        %1116 = vmatpush.msra.mxu0 0.0
        %1117 = vmatpush.msra.mxu0 0.0
        %1118 = vmatpush.msra.mxu0 0.0
        %1119 = vmatpush.msra.mxu0 0.0
        %1120 = vmatpush.msra.mxu0 0.0
        %1121 = vmatpush.msra.mxu0 0.0
        %1122 = vmatpush.msra.mxu0 0.0
        %1123 = vmatpush.msra.mxu0 0.0
        %1124 = vmatpush.msra.mxu0 0.0
        %1125 = vmatpush.msra.mxu0 0.0
        %1126 = vmatpush.msra.mxu0 0.0
        %1127 = vmatpush.msra.mxu0 0.0
        %1128 = vmatpush.msra.mxu0 0.0
        %1129 = vmatpush.msra.mxu0 %v1007
        %1130 = vmatpush.msra.mxu0 %v1006
        %1131 = vmatmul.f32.gmra.mxu0 %v1113
        %v1132 = vpop.f32.mrf.mxu0
        %v1133 = vadd.f32 0.0, %v1132
        %1134 = vdwg.mxu0
        %v1135 = vld [vmem:[#allocation13] sm:$0xff]
        %v1136 = vld [vmem:[#allocation13 + $0x8] sm:$0xff]
        %v1137 = vld [vmem:[#allocation13 + $0x10] sm:$0xff]
        %v1138 = vld [vmem:[#allocation13 + $0x18] sm:$0xff]
        %v1140 = vsel %vm1008, %v1110, 0
        %1142 = vmatpush.msra.mxu0 0.0
        %1143 = vmatpush.msra.mxu0 0.0
        %1144 = vmatpush.msra.mxu0 0.0
        %1145 = vmatpush.msra.mxu0 0.0
        %1146 = vmatpush.msra.mxu0 0.0
        %1147 = vmatpush.msra.mxu0 0.0
        %1148 = vmatpush.msra.mxu0 0.0
        %1149 = vmatpush.msra.mxu0 0.0
        %1150 = vmatpush.msra.mxu0 0.0
        %1151 = vmatpush.msra.mxu0 0.0
        %1152 = vmatpush.msra.mxu0 0.0
        %1153 = vmatpush.msra.mxu0 0.0
        %1154 = vmatpush.msra.mxu0 0.0
        %1155 = vmatpush.msra.mxu0 0.0
        %1156 = vmatpush.msra.mxu0 %v1136
        %1157 = vmatpush.msra.mxu0 %v1135
        %1158 = vmatmul.f32.gmra.mxu0 %v1140
        %v1159 = vpop.f32.mrf.mxu0
        %v1160 = vadd.f32 0.0, %v1159
        %1161 = vdwg.mxu0
        %v1163 = vsel %vm1008, %v1133, 0
        %1165 = vmatpush.msra.mxu0 0.0
        %1166 = vmatpush.msra.mxu0 0.0
        %1167 = vmatpush.msra.mxu0 0.0
        %1168 = vmatpush.msra.mxu0 0.0
        %1169 = vmatpush.msra.mxu0 0.0
        %1170 = vmatpush.msra.mxu0 0.0
        %1171 = vmatpush.msra.mxu0 0.0
        %1172 = vmatpush.msra.mxu0 0.0
        %1173 = vmatpush.msra.mxu0 0.0
        %1174 = vmatpush.msra.mxu0 0.0
        %1175 = vmatpush.msra.mxu0 0.0
        %1176 = vmatpush.msra.mxu0 0.0
        %1177 = vmatpush.msra.mxu0 0.0
        %1178 = vmatpush.msra.mxu0 0.0
        %1179 = vmatpush.msra.mxu0 %v1138
        %1180 = vmatpush.msra.mxu0 %v1137
        %1181 = vmatmul.f32.gmra.mxu0 %v1163
        %v1182 = vpop.f32.mrf.mxu0
        %v1183 = vadd.f32 0.0, %v1182
        %1184 = vdwg.mxu0
        %v1185 = vsel %vm880, %v1160, 0.0
        %v1186 = vsel %vm880, %v1183, 0.0
        %v1187 = vadd.f32 %v1185, %v1186
        %v1188 = vld [vmem:[%s6] sm:$0x1]
        %v1190 = vperm.slane %v1188, 0
        %v1192 = vadd.f32 %v1187, %v1190
        %1193 = vst.msk [vmem:[%s421] sm:$0xff] %vm880, %v1192
        %s1194 = sand.u32 %s210, 1
        %s1195 = scalar_lea.sflag [#allocation6], %s1194
        %s1196 = sand.u32 %s210, 1
        %s1197 = smul.addr %s1196, 8
        %s1198 = scalar_lea.vmem [#allocation15], %s1197
        // Predicated region
        $region77: #{tpu_custom_call.1} parent=47 // pred_check
          %p1199 = pneg %p220
        $region78: #{tpu_custom_call.1} parent=47 // pred_check_branch
          %1201 = sbr.rel (%p1199) target = $region80
        $region79: #{tpu_custom_call.1} parent=47 // pred_region
          %1203 = vsyncadd %s1195, 0
          %s1204 = smul.addr %s33, 2
          %s1205 = sadd.s32 %s34, %s1204
          %s1206 = smul.addr %s1205, 8
          %s1207 = scalar_lea.hbm %s7, %s1206
          %s1209 = sshll.u32 %s1198, 4
          %s1210 = int_to_ptr.vmem [resolvable:$true] %s1209
          %s1211 = sshll.u32 %s1207, 4
          %s1212 = int_to_ptr.hbm [resolvable:$true] %s1211
          %1214 = dma.vmem_to_hbm [thread:$0]  %s1210, 128, %s1212, %s1195
        $region80: #{tpu_custom_call.1} parent=47 // pred_fallthru
          _
      $region48: #{tpu_custom_call.1} parent=5 // pred_fallthru
        _
      %p1215 = scmp.le.s32.totalorder 2, %s24
      // Predicated region
      $region81: #{tpu_custom_call.1} parent=5 // pred_check
        %p1216 = pneg %p1215
      $region82: #{tpu_custom_call.1} parent=5 // pred_check_branch
        %1218 = sbr.rel (%p1216) target = $region84
      $region83: #{tpu_custom_call.1} parent=5 // pred_region
        %s1219 = ssub.s32 %s24, 2
        // Predicated region
        $region85: #{tpu_custom_call.1} parent=83 // pred_check
          %p1220 = pneg %p226
        $region86: #{tpu_custom_call.1} parent=83 // pred_check_branch
          %1222 = sbr.rel (%p1220) target = $region88
        $region87: #{tpu_custom_call.1} parent=83 // pred_region
          %s1223 = sand.u32 %s211, 1
          %s1224 = scalar_lea.sflag [#allocation6], %s1223
          %s1225 = sand.u32 %s211, 1
          %s1226 = smul.addr %s1225, 8
          %s1227 = scalar_lea.vmem [#allocation15], %s1226
          %1229 = dma.done %s1224, 128
        $region88: #{tpu_custom_call.1} parent=83 // pred_fallthru
          _
      $region84: #{tpu_custom_call.1} parent=5 // pred_fallthru
        _
    $region6: #{tpu_custom_call.1} parent=1 // loop_footer
      %s28 = sadd.s32 1, %s24
    $region7: #{tpu_custom_call.1} parent=1 // loop_footer_branch
      %23 = sbr.rel target = $region3
    $region8: #{tpu_custom_call.1} parent=1 // loop_exit
      _
    %1230 = vsyncpa [#allocation5], 1
    %s1231 = scalar_lea.sflag [#allocation5], 1
    %1232 = vsyncpa %s1231, 1
    %1233 = vsyncpa [#allocation8], 1
    %s1234 = scalar_lea.sflag [#allocation8], 1
    %1235 = vsyncpa %s1234, 1
    %1236 = vsyncpa [#allocation11], 1
    %1237 = vsyncpa [#allocation14], 1
    %1238 = vsyncpa [#allocation6], 1
    %s1239 = scalar_lea.sflag [#allocation6], 1
    %1240 = vsyncpa %s1239, 1

</llo_original>
